<compile_context>
chip_gen: v5e
topology: v5e:2x2
jax: 0.10.0
libtpu: 0.0.40
codegen_flags: <defaults>
</compile_context>

<pallas_src>
import math

import jax
import jax.numpy as jnp
from jax.experimental import pallas as pl
from jax.experimental.pallas import tpu as pltpu

SCALE = 32.0 / 2 ** 4          # 2.0
INV_SCALE = 1.0 / SCALE
ZERO_POINT = 16
QMIN, QMAX = -16, 15

_TARGET_IN_BYTES = 4 << 20     # ~4 MiB of input per block
_PIPE_BYTES_CAP = 12 << 20     # in+out per block; x2 (double buffer) = 24 MiB
_VMEM_LIMIT = 32 << 20         # within v7x scoped budget, raises v5e's default


def _quant_kernel(x_ref, o_ref):
    # Upcast in-kernel (free VPU op) so bf16/f16 inputs don't need a wrapper
    # cast that would write an extra f32 copy to HBM.
    x = x_ref[...].astype(jnp.float32)
    # jnp.round, like torch.round, rounds half-to-even.
    q = jnp.round(x * jnp.float32(INV_SCALE)) + jnp.float32(ZERO_POINT)
    # Clamp the float BEFORE the integer cast so +/-Inf saturate to -16/15.
    # NaN -> int is implementation-defined, exactly as it is for
    # torch.round/clamp/.to(torch.int) on NaN inputs.
    q = jnp.clip(q, jnp.float32(QMIN), jnp.float32(QMAX))
    # Route through int32 (no-op when o_ref is int32; safe narrowing for int8).
    o_ref[...] = q.astype(jnp.int32).astype(o_ref.dtype)


def _ceil_to(v: int, m: int) -> int:
    return -(-v // m) * m


def _sublane_pack(dtype) -> int:
    # Rows per native sublane tile: f32/i32 -> 8, bf16/f16 -> 16, int8 -> 32.
    itemsize = jnp.dtype(dtype).itemsize
    return 8 * max(1, 4 // itemsize)


def _row_footprint_bytes(trailing, dtype) -> int:
    """VMEM bytes one leading-dim row of a block occupies (incl. tile padding)."""
    itemsize = jnp.dtype(dtype).itemsize
    if len(trailing) == 1:
        # Lane-dense 2D path: tiled dim is the sublane dim, last dim % 128 == 0.
        return _ceil_to(trailing[0], 128) * itemsize
    lead = math.prod(trailing[:-2]) if len(trailing) > 2 else 1
    sub = _sublane_pack(dtype)
    return (lead * _ceil_to(trailing[-2], sub) * _ceil_to(trailing[-1], 128)
            * itemsize)


def _run_rowwise(xnd: jax.Array, out_dtype, pack: int) -> jax.Array:
    """Elementwise quantization, tiling the leading dim with a 1D parallel grid."""
    rows = xnd.shape[0]
    trailing = tuple(xnd.shape[1:])

    in_row = _row_footprint_bytes(trailing, xnd.dtype)
    out_row = _row_footprint_bytes(trailing, out_dtype)

    # Byte-aware block sizing: ~4 MiB of input per block, capped so the
    # double-buffered in+out pipeline stays under ~24 MiB of VMEM on all chips.
    target_r = min(max(1, _TARGET_IN_BYTES // in_row),
                   max(1, _PIPE_BYTES_CAP // (in_row + out_row)))
    target_r = max(pack, (target_r // pack) * pack)

    if rows <= target_r:
        if rows >= 2 * pack:
            # Split into >= 2 blocks so the "parallel" axis can be sharded
            # across both TensorCores on v7x (no effect on v5e/v6e).
            tile_r = _ceil_to(-(-rows // 2), pack)
        else:
            tile_r = rows          # single full-extent block (exempt from 8,128)
    else:
        tile_r = target_r

    grid = (pl.cdiv(rows, tile_r),)
    block = (tile_r,) + trailing
    zeros = (0,) * len(trailing)
    index_map = lambda i: (i,) + zeros

    return pl.pallas_call(
        _quant_kernel,
        out_shape=jax.ShapeDtypeStruct(xnd.shape, out_dtype),
        grid_spec=pltpu.PrefetchScalarGridSpec(
            num_scalar_prefetch=0,
            grid=grid,
            in_specs=[pl.BlockSpec(block, index_map)],
            out_specs=pl.BlockSpec(block, index_map),
        ),
        compiler_params=pltpu.CompilerParams(
            dimension_semantics=("parallel",),
            vmem_limit_bytes=_VMEM_LIMIT,
        ),
    )(xnd)


def quant_stub(x: jax.Array, out_dtype=jnp.int32) -> jax.Array:
    """Quantize x (any shape, float) -> integer codes, same shape.

    out_dtype defaults to int32 (== torch.int, matching the PyTorch stub).
    The codes fit in 5 bits, so out_dtype=jnp.int8 cuts output HBM traffic 4x
    for consumers that accept the narrower dtype.
    """
    orig_shape = x.shape
    n = x.size
    if n == 0:
        return jnp.zeros(orig_shape, out_dtype)

    pack = max(_sublane_pack(x.dtype), _sublane_pack(out_dtype))

    # Fast path: lane-dense 2D view (free reshape, no padding). Prefer the
    # widest lane count that still leaves >= 2*pack rows (so the grid can have
    # >= 2 blocks for v7x dual-TC sharding); otherwise the widest divisor.
    candidates = (4096, 2048, 1024, 512, 256, 128)
    lanes = None
    for cand in candidates:
        if n % cand == 0 and n // cand >= 2 * pack:
            lanes = cand
            break
    if lanes is None:
        for cand in candidates:
            if n % cand == 0:
                lanes = cand
                break

    if lanes is not None:
        out = _run_rowwise(x.reshape(n // lanes, lanes), out_dtype, pack)
        return out.reshape(orig_shape)

    # Ragged path: no jnp.pad / slice-back (each would be an extra full-array
    # HBM pass).  Collapse leading dims (layout-preserving reshape) and tile
    # the leading dim; trailing dims stay full-extent in the block, which is
    # exempt from the (8,128) divisibility rule.
    # TODO(synk): a last dim < 128 means masked partial stores in the kernel;
    # still cheaper than the pad + slice-back copies it replaces.
    if x.ndim >= 2:
        lead = math.prod(orig_shape[:-2])
        x3d = x.reshape(lead, orig_shape[-2], orig_shape[-1])
    else:
        x3d = x.reshape(1, 1, n)
    out = _run_rowwise(x3d, out_dtype, 1)
    return out.reshape(orig_shape)


def dequantize(x_int: jax.Array) -> jax.Array:
    # Plain-JAX glue matching myQuantStub.dequantize (not a hot path).
    return (x_int - ZERO_POINT).astype(jnp.float32) * SCALE


def _reference(x: jax.Array) -> jax.Array:
    xf = x.astype(jnp.float32)
    return jnp.clip(jnp.round(xf / SCALE) + ZERO_POINT, QMIN, QMAX).astype(jnp.int32)


if __name__ == "__main__":
    key = jax.random.PRNGKey(0)
    # NCHW activation tensor, small shape consistent with the module.
    x = jax.random.normal(key, (2, 4, 16, 16), dtype=jnp.float32) * 8.0

    y = quant_stub(x)
    jax.block_until_ready(y)

    y_ref = _reference(x)
    assert y.shape == x.shape
    assert y.dtype == jnp.int32
    assert bool(jnp.all(y == y_ref))

    # Ragged shape (numel not a multiple of 128) exercises the no-pad path.
    x2 = jax.random.normal(jax.random.PRNGKey(1), (3, 5, 7), dtype=jnp.float32) * 8.0
    y2 = quant_stub(x2)
    jax.block_until_ready(y2)
    assert y2.shape == x2.shape
    assert bool(jnp.all(y2 == _reference(x2)))

    # int8 variant: identical codes, 4x less store traffic (opt-in, diverges
    # from torch.int on dtype only).
    y8 = quant_stub(x, out_dtype=jnp.int8)
    jax.block_until_ready(y8)
    assert bool(jnp.all(y8.astype(jnp.int32) == y_ref))

    print("KERNEL_OK")
</pallas_src>

<mosaic_0001>
module attributes {stable_mosaic.version = 11 : i64} {
  func.func @_quant_kernel(%arg0: i32, %arg1: memref<8x128xf32, #tpu.memory_space<vmem>>, %arg2: memref<8x128xi32, #tpu.memory_space<vmem>>) attributes {dimension_semantics = [#tpu.dimension_semantics<parallel>], iteration_bounds = array<i64: 2>, scalar_prefetch = 0 : i64, scratch_operands = 0 : i64, tpu.core_type = #tpu.core_type<tc>, window_params = [{transform_indices = @transform_0, window_bounds = array<i64: 8, 128>}, {transform_indices = @transform_1, window_bounds = array<i64: 8, 128>}]} {
    %c0 = arith.constant 0 : index
    %c0_0 = arith.constant 0 : index
    %0 = vector.load %arg1[%c0, %c0_0] : memref<8x128xf32, #tpu.memory_space<vmem>>, vector<8x128xf32>
    %cst = arith.constant 5.000000e-01 : f32
    %1 = vector.broadcast %cst : f32 to vector<8x128xf32>
    %2 = arith.mulf %0, %1 : vector<8x128xf32>
    %3 = math.roundeven %2 : vector<8x128xf32>
    %cst_1 = arith.constant 1.600000e+01 : f32
    %4 = vector.broadcast %cst_1 : f32 to vector<8x128xf32>
    %5 = arith.addf %3, %4 : vector<8x128xf32>
    %cst_2 = arith.constant -1.600000e+01 : f32
    %cst_3 = arith.constant 1.500000e+01 : f32
    %6 = vector.broadcast %cst_2 : f32 to vector<8x128xf32>
    %7 = arith.maximumf %6, %5 : vector<8x128xf32>
    %8 = vector.broadcast %cst_3 : f32 to vector<8x128xf32>
    %9 = arith.minimumf %8, %7 : vector<8x128xf32>
    %10 = arith.fptosi %9 : vector<8x128xf32> to vector<8x128xi32>
    %c0_4 = arith.constant 0 : index
    %c0_5 = arith.constant 0 : index
    %11 = vector.load %arg2[%c0_4, %c0_5] : memref<8x128xi32, #tpu.memory_space<vmem>>, vector<8x128xi32>
    tpu.vector_store %arg2[%c0_4, %c0_5], %10 {strides = array<i32>} : memref<8x128xi32, #tpu.memory_space<vmem>>, vector<8x128xi32>,
    return
  }
  func.func @transform_0(%arg0: i32) -> (i32, i32) {
    %c0_i32 = arith.constant 0 : i32
    %c0_i32_0 = arith.constant 0 : i32
    return %arg0, %c0_i32 : i32, i32
  }
  func.func @transform_1(%arg0: i32) -> (i32, i32) {
    %c0_i32 = arith.constant 0 : i32
    %c0_i32_0 = arith.constant 0 : i32
    return %arg0, %c0_i32 : i32, i32
  }
}

</mosaic_0001>

<llo_original>
// kernel: tpu_custom_call.1
$region0: #{tpu_custom_call.1}
  #allocation0 [shape = 'u32[]', space=smem, size = 0x4, offset = 0x4, fixed_abs, tag = 'smem constant byte address 0x4 - core index']
  #allocation1 [shape = 'u32[72,128]{1,0:T(1,128)}', space=vmem, size = 0x9000, scoped, tag = 'internal scratch']
  %s0 = inlined_call_operand.hbm [shape: f32[16,128], index: 0, kind: input, shape index: {}]
  %s1 = inlined_call_operand.hbm [shape: s32[16,128], index: 1, kind: output, shape index: {}]
  %s2 = sld [smem:[#allocation0]]
  $region41: #{tpu_custom_call.1} parent=0
    _
  %s4 = ssub.s32 1, %s2
  %s5 = scalar_select 0, %s4, %s2
  $region1: #{tpu_custom_call.1} parent=0
    #allocation2 [shape = 'u8[8192]{0}', space=vmem, size = 0x2000, scoped, tag = 'input window, operand 0']
    #allocation3 [shape = 's32[2]{0}', space=sflag, size = 0x8, scoped, tag = 'scoped memory for tpu_custom_call.1']
    #allocation4 [shape = 's32[2]{0}', space=sflag, size = 0x8, scoped, tag = 'scoped memory for tpu_custom_call.1']
    #allocation5 [shape = 'u8[8192]{0}', space=vmem, size = 0x2000, scoped, tag = 'output window, operand 0']
    %6 = vsyncpa [#allocation3], 0
    %s7 = scalar_lea.sflag [#allocation3], 1
    %8 = vsyncpa %s7, 0
    %9 = vsyncpa [#allocation4], 0
    %s10 = scalar_lea.sflag [#allocation4], 1
    %11 = vsyncpa %s10, 0
    loop: start=0, step=1, limit=4
    $region2: #{tpu_custom_call.1} parent=1 // loop_pre_header
      _
    $region3: #{tpu_custom_call.1} parent=1 // loop_header
      %s13 = sphi 0, %s17
      %p14 = scmp.ge.s32.totalorder %s13, 4
      %s23 = sphi 0, %s25
      %s26 = sphi 0, %s23
      %s27 = sphi 0, %s26
      %s43 = sphi 0, %s27
      %s49 = sphi 0, %s51
      %s52 = sphi 0, %s49
      %s53 = sphi 0, %s52
      %s69 = sphi 0, %s53
    $region4: #{tpu_custom_call.1} parent=1 // loop_header_branch
      %16 = sbr.rel (%p14) target = $region8
    $region5: #{tpu_custom_call.1} parent=1 // loop_body
      %s18 = ssub.s32 %s13, 1
      %s19 = ssub.s32 %s13, 2
      %s20 = sadd.s32 %s13, 1
      %s21 = ssub.s32 %s13, %s20
      %p22 = scmp.eq.s32.totalorder %s21, 0
      %s24 = sadd.s32 %s23, 1
      %s25 = scalar_select %p22, %s23, %s24
      %p28 = pneg %p22
      %p29 = scmp.eq.s32.totalorder %s13, 1
      %p30 = por %p28, %p29
      %p31 = scmp.ne.s32.totalorder %s23, %s26
      %p32 = scmp.eq.s32.totalorder %s13, 0
      %p33 = por %p31, %p32
      %p34 = scmp.ne.s32.totalorder %s23, %s26
      %p35 = scmp.eq.s32.totalorder %s18, 1
      %p36 = por %p34, %p35
      %p37 = scmp.ne.s32.totalorder %s26, %s27
      %p38 = scmp.eq.s32.totalorder %s18, 0
      %p39 = por %p37, %p38
      %p40 = scmp.ne.s32.totalorder %s26, %s27
      %p41 = scmp.eq.s32.totalorder %s19, 1
      %p42 = por %p40, %p41
      %p44 = scmp.ne.s32.totalorder %s27, %s43
      %p45 = scmp.eq.s32.totalorder %s19, 0
      %p46 = por %p44, %p45
      %s47 = ssub.s32 %s13, %s20
      %p48 = scmp.eq.s32.totalorder %s47, 0
      %s50 = sadd.s32 %s49, 1
      %s51 = scalar_select %p48, %s49, %s50
      %p54 = pneg %p48
      %p55 = scmp.eq.s32.totalorder %s13, 1
      %p56 = por %p54, %p55
      %p57 = scmp.ne.s32.totalorder %s49, %s52
      %p58 = scmp.eq.s32.totalorder %s13, 0
      %p59 = por %p57, %p58
      %p60 = scmp.ne.s32.totalorder %s49, %s52
      %p61 = scmp.eq.s32.totalorder %s18, 1
      %p62 = por %p60, %p61
      %p63 = scmp.ne.s32.totalorder %s52, %s53
      %p64 = scmp.eq.s32.totalorder %s18, 0
      %p65 = por %p63, %p64
      %p66 = scmp.ne.s32.totalorder %s52, %s53
      %p67 = scmp.eq.s32.totalorder %s19, 1
      %p68 = por %p66, %p67
      %p70 = scmp.ne.s32.totalorder %s53, %s69
      %p71 = scmp.eq.s32.totalorder %s19, 0
      %p72 = por %p70, %p71
      %p73 = scmp.le.s32.totalorder 1, %s13
      %p74 = scmp.lt.s32.totalorder %s13, 3
      %p75 = pnand %p73, %p74
      %p76 = pneg %p75
      // Predicated region
      $region9: #{tpu_custom_call.1} parent=5 // pred_check
        _
      $region10: #{tpu_custom_call.1} parent=5 // pred_check_branch
        %78 = sbr.rel (%p75) target = $region12
      $region11: #{tpu_custom_call.1} parent=5 // pred_region
        %s79 = ssub.s32 %s13, 1
      $region12: #{tpu_custom_call.1} parent=5 // pred_fallthru
        _
      %p80 = scmp.lt.s32.totalorder %s13, 2
      // Predicated region
      $region13: #{tpu_custom_call.1} parent=5 // pred_check
        %p81 = pneg %p80
      $region14: #{tpu_custom_call.1} parent=5 // pred_check_branch
        %83 = sbr.rel (%p81) target = $region16
      $region15: #{tpu_custom_call.1} parent=5 // pred_region
        // Predicated region
        $region17: #{tpu_custom_call.1} parent=15 // pred_check
          %p84 = pneg %p33
        $region18: #{tpu_custom_call.1} parent=15 // pred_check_branch
          %86 = sbr.rel (%p84) target = $region20
        $region19: #{tpu_custom_call.1} parent=15 // pred_region
          %s87 = sand.u32 %s23, 1
          %s88 = scalar_lea.sflag [#allocation3], %s87
          %s89 = sand.u32 %s23, 1
          %s90 = smul.addr %s89, 8
          %s91 = scalar_lea.vmem [#allocation2], %s90
          %93 = vsyncadd %s88, 0
          %s94 = smul.addr %s13, 8
          %s95 = scalar_lea.hbm %s0, %s94
          %s97 = sshll.u32 %s95, 4
          %s98 = int_to_ptr.hbm [resolvable:$true] %s97
          %s99 = sshll.u32 %s91, 4
          %s100 = int_to_ptr.vmem [resolvable:$true] %s99
          %102 = dma.hbm_to_vmem [thread:$0]  %s98, 128, %s100, %s88
        $region20: #{tpu_custom_call.1} parent=15 // pred_fallthru
          _
      $region16: #{tpu_custom_call.1} parent=5 // pred_fallthru
        _
      %p103 = scmp.le.s32.totalorder 1, %s13
      %p104 = scmp.lt.s32.totalorder %s13, 3
      %p105 = pnand %p103, %p104
      %p106 = pneg %p105
      // Predicated region
      $region21: #{tpu_custom_call.1} parent=5 // pred_check
        _
      $region22: #{tpu_custom_call.1} parent=5 // pred_check_branch
        %108 = sbr.rel (%p105) target = $region24
      $region23: #{tpu_custom_call.1} parent=5 // pred_region
        %s109 = ssub.s32 %s13, 1
        %s110 = sand.u32 %s26, 1
        %s111 = scalar_lea.sflag [#allocation3], %s110
        %s112 = sand.u32 %s26, 1
        %s113 = smul.addr %s112, 8
        %s114 = scalar_lea.vmem [#allocation2], %s113
        // Predicated region
        $region25: #{tpu_custom_call.1} parent=23 // pred_check
          %p115 = pneg %p39
        $region26: #{tpu_custom_call.1} parent=23 // pred_check_branch
          %117 = sbr.rel (%p115) target = $region28
        $region27: #{tpu_custom_call.1} parent=23 // pred_region
          %119 = dma.done %s111, 128
        $region28: #{tpu_custom_call.1} parent=23 // pred_fallthru
          _
        %s120 = sand.u32 %s26, 1
        %s121 = scalar_lea.sflag [#allocation3], %s120
        %s122 = sand.u32 %s26, 1
        %s123 = smul.addr %s122, 8
        %s124 = scalar_lea.vmem [#allocation2], %s123
        %p125 = pneg %p39
        %p126 = pneg %p36
        %p127 = pneg %p65
        %p128 = pneg %p62
        %s129 = sand.u32 %s52, 1
        %s130 = scalar_lea.sflag [#allocation4], %s129
        %s131 = sand.u32 %s52, 1
        %s132 = smul.addr %s131, 8
        %s133 = scalar_lea.vmem [#allocation5], %s132
        %v134 = vld [vmem:[%s114] sm:$0xff]
        %v135 = vmul.f32 %v134, 0.5
        %v136 = vround.ne.pseudo %v135
        %v137 = vadd.f32 %v136, 16.0
        %v138 = vmax.f32 %v137, -16.0
        %v139 = vmin.f32 %v138, 15.0
        %v140 = vcvt.f32.s32.to.zero.pseudo %v139
        %141 = vst [vmem:[%s133] sm:$0xff] %v140
        %s142 = sand.u32 %s52, 1
        %s143 = scalar_lea.sflag [#allocation4], %s142
        %s144 = sand.u32 %s52, 1
        %s145 = smul.addr %s144, 8
        %s146 = scalar_lea.vmem [#allocation5], %s145
        // Predicated region
        $region29: #{tpu_custom_call.1} parent=23 // pred_check
          %p147 = pneg %p62
        $region30: #{tpu_custom_call.1} parent=23 // pred_check_branch
          %149 = sbr.rel (%p147) target = $region32
        $region31: #{tpu_custom_call.1} parent=23 // pred_region
          %151 = vsyncadd %s143, 0
          %s152 = smul.addr %s18, 8
          %s153 = scalar_lea.hbm %s1, %s152
          %s155 = sshll.u32 %s146, 4
          %s156 = int_to_ptr.vmem [resolvable:$true] %s155
          %s157 = sshll.u32 %s153, 4
          %s158 = int_to_ptr.hbm [resolvable:$true] %s157
          %160 = dma.vmem_to_hbm [thread:$0]  %s156, 128, %s158, %s143
        $region32: #{tpu_custom_call.1} parent=23 // pred_fallthru
          _
      $region24: #{tpu_custom_call.1} parent=5 // pred_fallthru
        _
      %p161 = scmp.le.s32.totalorder 2, %s13
      // Predicated region
      $region33: #{tpu_custom_call.1} parent=5 // pred_check
        %p162 = pneg %p161
      $region34: #{tpu_custom_call.1} parent=5 // pred_check_branch
        %164 = sbr.rel (%p162) target = $region36
      $region35: #{tpu_custom_call.1} parent=5 // pred_region
        %s165 = ssub.s32 %s13, 2
        // Predicated region
        $region37: #{tpu_custom_call.1} parent=35 // pred_check
          %p166 = pneg %p68
        $region38: #{tpu_custom_call.1} parent=35 // pred_check_branch
          %168 = sbr.rel (%p166) target = $region40
        $region39: #{tpu_custom_call.1} parent=35 // pred_region
          %s169 = sand.u32 %s53, 1
          %s170 = scalar_lea.sflag [#allocation4], %s169
          %s171 = sand.u32 %s53, 1
          %s172 = smul.addr %s171, 8
          %s173 = scalar_lea.vmem [#allocation5], %s172
          %175 = dma.done %s170, 128
        $region40: #{tpu_custom_call.1} parent=35 // pred_fallthru
          _
      $region36: #{tpu_custom_call.1} parent=5 // pred_fallthru
        _
    $region6: #{tpu_custom_call.1} parent=1 // loop_footer
      %s17 = sadd.s32 1, %s13
    $region7: #{tpu_custom_call.1} parent=1 // loop_footer_branch
      %12 = sbr.rel target = $region3
    $region8: #{tpu_custom_call.1} parent=1 // loop_exit
      _
    %176 = vsyncpa [#allocation3], 1
    %s177 = scalar_lea.sflag [#allocation3], 1
    %178 = vsyncpa %s177, 1
    %179 = vsyncpa [#allocation4], 1
    %s180 = scalar_lea.sflag [#allocation4], 1
    %181 = vsyncpa %s180, 1

</llo_original>
